<compile_context>
chip_gen: v6e
topology: v6e:2x2x1
jax: 0.10.0
libtpu: 0.0.40
codegen_flags: <defaults>
</compile_context>

<pallas_src>
import functools

import jax
import jax.numpy as jnp
from jax.experimental import pallas as pl
from jax.experimental.pallas import tpu as pltpu

_MIB = 1024 * 1024


# ----------------------------------------------------------------------------
# Kernels
# ----------------------------------------------------------------------------

def _rows_affine_kernel(x_ref, w_ref, o_ref, *, eps, inv_dim, low_precision_mul):
    """Standard path: one logical row per block row, reduce over the lane axis."""
    x = x_ref[...]                                     # (tile_rows, dim)
    xf = x.astype(jnp.float32)
    sumsq = jnp.sum(xf * xf, axis=-1, keepdims=True)   # f32 reduction always
    inv_rms = jax.lax.rsqrt(sumsq * inv_dim + eps)
    if low_precision_mul:
        y = x * inv_rms.astype(x.dtype) * w_ref[...]   # bf16 VALU on v6e/v7x
    else:
        y = xf * inv_rms * w_ref[...]
    o_ref[...] = y.astype(o_ref.dtype)


def _rows_plain_kernel(x_ref, o_ref, *, eps, inv_dim, low_precision_mul):
    x = x_ref[...]
    xf = x.astype(jnp.float32)
    sumsq = jnp.sum(xf * xf, axis=-1, keepdims=True)
    inv_rms = jax.lax.rsqrt(sumsq * inv_dim + eps)
    if low_precision_mul:
        y = x * inv_rms.astype(x.dtype)
    else:
        y = xf * inv_rms
    o_ref[...] = y.astype(o_ref.dtype)


def _packed_affine_kernel(x_ref, seg_ref, w_ref, o_ref, *, eps, inv_dim,
                          low_precision_mul):
    """Lane-folded path for dim < 128 (dim divides 128): g = 128 // dim logical
    rows are packed per 128-lane block row (lane-dense loads/stores). The
    per-segment reduction and broadcast-back run on the (idle) MXU."""
    x = x_ref[...]                                     # (tile_rows, 128)
    xf = x.astype(jnp.float32)
    seg = seg_ref[...]                                 # (128, g) 0/1 indicator
    seg_sumsq = jax.lax.dot_general(                   # (tile_rows, g)
        xf * xf, seg, (((1,), (0,)), ((), ())),
        preferred_element_type=jnp.float32)
    inv_rms = jax.lax.rsqrt(seg_sumsq * inv_dim + eps)
    inv_lane = jax.lax.dot_general(                    # (tile_rows, 128)
        inv_rms, seg, (((1,), (1,)), ((), ())),
        preferred_element_type=jnp.float32)
    if low_precision_mul:
        y = x * inv_lane.astype(x.dtype) * w_ref[...]
    else:
        y = xf * inv_lane * w_ref[...]
    o_ref[...] = y.astype(o_ref.dtype)


def _packed_plain_kernel(x_ref, seg_ref, o_ref, *, eps, inv_dim,
                         low_precision_mul):
    x = x_ref[...]
    xf = x.astype(jnp.float32)
    seg = seg_ref[...]
    seg_sumsq = jax.lax.dot_general(
        xf * xf, seg, (((1,), (0,)), ((), ())),
        preferred_element_type=jnp.float32)
    inv_rms = jax.lax.rsqrt(seg_sumsq * inv_dim + eps)
    inv_lane = jax.lax.dot_general(
        inv_rms, seg, (((1,), (1,)), ((), ())),
        preferred_element_type=jnp.float32)
    if low_precision_mul:
        y = x * inv_lane.astype(x.dtype)
    else:
        y = xf * inv_lane
    o_ref[...] = y.astype(o_ref.dtype)


# ----------------------------------------------------------------------------
# Hardware-aware sizing helpers
# ----------------------------------------------------------------------------

def _sublane_pack(dtype) -> int:
    """Rows per vreg sublane group: 8 for f32, 16 for bf16, 32 for int8/fp8."""
    itemsize = jnp.dtype(dtype).itemsize
    return max(8, 32 // itemsize)


def _tpu_vmem_and_cores():
    """(physical VMEM bytes per TensorCore, TensorCores per chip), best effort."""
    vmem = None
    cores = None
    try:
        info = pltpu.get_tpu_info()
        vmem = getattr(info, "vmem_capacity_bytes", None)
        for name in ("num_cores", "num_tensorcores", "tensorcores_per_chip"):
            c = getattr(info, name, None)
            if c:
                cores = int(c)
                break
    except Exception:
        pass
    kind = ""
    try:
        kind = (jax.devices()[0].device_kind or "").lower()
    except Exception:
        pass
    is_v7 = ("v7" in kind) or ("7x" in kind)
    if not vmem:
        # Conservative fallback: 64 MiB (v7x / unknown), 128 MiB for v5e/v6e.
        vmem = 64 * _MIB if (is_v7 or not kind) else 128 * _MIB
    if not cores:
        cores = 2 if is_v7 else 1
    return int(vmem), int(cores)


def _vmem_budget_and_limit(vmem_bytes):
    """~24 MiB budget / 48 MiB limit on v7x; ~48 MiB / 96 MiB on v5e/v6e."""
    budget = max(8 * _MIB, min((vmem_bytes * 3) // 8, 64 * _MIB))
    limit = max(32 * _MIB, min((vmem_bytes * 3) // 4, 112 * _MIB))
    return budget, limit


def _choose_tile_rows(rows, row_width, dtype, budget_bytes, num_cores):
    """Largest sublane-aligned row tile whose double-buffered in+out working
    set (plus f32 temporaries) fits the VMEM budget (sized by bytes)."""
    pack = _sublane_pack(dtype)
    itemsize = jnp.dtype(dtype).itemsize
    # in + out, double-buffered, plus ~2 f32-wide temporaries in the body.
    bytes_per_row = row_width * (4 * itemsize + 2 * 4)
    tile = max(pack, (budget_bytes // max(bytes_per_row, 1)) // pack * pack)
    rows_rounded = ((rows + pack - 1) // pack) * pack
    tile = min(tile, rows_rounded)

    if num_cores >= 2:
        # v7x megacore: give each TensorCore >= 2 tiles when possible and
        # prefer a step count that is a multiple of the core count.
        min_steps = 2 * num_cores
        if rows >= min_steps * pack:
            while tile > pack and pl.cdiv(rows, tile) < min_steps:
                tile = max(pack, ((tile // 2) // pack) * pack)
        steps = pl.cdiv(rows, tile)
        if steps > 1 and steps % num_cores:
            even_steps = ((steps // num_cores) + 1) * num_cores
            cand = max(pack, ((pl.cdiv(rows, even_steps) + pack - 1) // pack) * pack)
            if pl.cdiv(rows, cand) % num_cores == 0:
                tile = cand
    return tile


# ----------------------------------------------------------------------------
# Public wrapper
# ----------------------------------------------------------------------------

def rmsnorm(x, weight=None, eps: float = 1e-6, tile_rows=None):
    """RMSNorm over the last axis of x (matches the PyTorch module's forward).

    weight: shape (dim,) scale (affine=True) or None (affine=False).
    tile_rows: optional override for rows per grid step (in packed rows when
    the lane-folded path is active); must be a multiple of the dtype's sublane
    packing. Default auto-sizes to the generation-aware VMEM budget.
    """
    orig_shape = x.shape
    dim = int(orig_shape[-1])
    dtype = x.dtype
    x2 = x.reshape(-1, dim)
    rows = int(x2.shape[0])
    if rows == 0 or dim == 0:
        return x

    # Sub-32-bit floats (bf16/fp16): keep sum-of-squares + rsqrt in f32 but do
    # the normalize/scale multiplies in the input dtype (bf16 VALU on v6e/v7x).
    low_precision_mul = (jnp.issubdtype(dtype, jnp.floating)
                         and jnp.dtype(dtype).itemsize < 4)
    mul_dtype = dtype if low_precision_mul else jnp.float32

    vmem_bytes, num_cores = _tpu_vmem_and_cores()
    budget, vmem_limit = _vmem_budget_and_limit(vmem_bytes)

    # Lane folding for small dim: pack g = 128 // dim logical rows per 128-lane
    # block row so every load/store is an unmasked, lane-dense vst.
    lane_fold = (dim < 128) and (128 % dim == 0)
    # TODO(synk): dims that neither divide nor are a multiple of 128 (e.g. 96,
    # 192) still use the standard path with lane-masked stores on the edge vreg.
    if lane_fold:
        g = 128 // dim
        pad_rows = (-rows) % g
        x_k = x2 if pad_rows == 0 else jnp.pad(x2, ((0, pad_rows), (0, 0)))
        rows_k = (rows + pad_rows) // g
        dim_k = 128
        x_k = x_k.reshape(rows_k, dim_k)
        seg = (jnp.arange(dim_k, dtype=jnp.int32)[:, None] // dim ==
               jnp.arange(g, dtype=jnp.int32)[None, :]).astype(jnp.float32)
    else:
        g, pad_rows = 1, 0
        x_k, rows_k, dim_k, seg = x2, rows, dim, None

    if tile_rows is None:
        tile_rows = _choose_tile_rows(rows_k, dim_k, dtype, budget, num_cores)
    grid = (pl.cdiv(rows_k, tile_rows),)

    itemsize = jnp.dtype(dtype).itemsize
    w_bytes = 0 if weight is None else dim * jnp.dtype(weight.dtype).itemsize
    cost = pl.CostEstimate(
        flops=4 * rows * dim,
        transcendentals=rows,
        bytes_accessed=2 * rows * dim * itemsize + w_bytes,
    )
    compiler_params = pltpu.CompilerParams(
        dimension_semantics=("parallel",),
        vmem_limit_bytes=int(vmem_limit),
    )

    inv_dim = 1.0 / float(dim)          # fold 1/dim into the rsqrt argument
    kwargs = dict(eps=float(eps), inv_dim=inv_dim,
                  low_precision_mul=low_precision_mul)
    x_spec = pl.BlockSpec((tile_rows, dim_k), lambda i: (i, 0))
    out_spec = pl.BlockSpec((tile_rows, dim_k), lambda i: (i, 0))

    def const_spec(shape):
        # Constant block index: stays VMEM-resident across grid steps.
        return pl.BlockSpec(shape, lambda i: (0, 0))

    if weight is not None:
        # Pre-cast (and pre-tile for the folded path) the weight once here.
        w_k = weight.astype(mul_dtype)
        if lane_fold:
            w_k = jnp.tile(w_k, g)
        w_k = w_k.reshape(1, dim_k)
        if lane_fold:
            kernel = functools.partial(_packed_affine_kernel, **kwargs)
            in_specs = [x_spec, const_spec((dim_k, g)), const_spec((1, dim_k))]
            operands = (x_k, seg, w_k)
        else:
            kernel = functools.partial(_rows_affine_kernel, **kwargs)
            in_specs = [x_spec, const_spec((1, dim_k))]
            operands = (x_k, w_k)
    else:
        if lane_fold:
            kernel = functools.partial(_packed_plain_kernel, **kwargs)
            in_specs = [x_spec, const_spec((dim_k, g))]
            operands = (x_k, seg)
        else:
            kernel = functools.partial(_rows_plain_kernel, **kwargs)
            in_specs = [x_spec]
            operands = (x_k,)

    out = pl.pallas_call(
        kernel,
        out_shape=jax.ShapeDtypeStruct((rows_k, dim_k), dtype),
        grid_spec=pltpu.PrefetchScalarGridSpec(
            num_scalar_prefetch=0,
            grid=grid,
            in_specs=in_specs,
            out_specs=out_spec,
        ),
        compiler_params=compiler_params,
        cost_estimate=cost,
    )(*operands)

    if lane_fold:
        out = out.reshape(rows_k * g, dim)
        if pad_rows:
            out = out[:rows]
    return out.reshape(orig_shape)


# ----------------------------------------------------------------------------
# Reference + self-test
# ----------------------------------------------------------------------------

def _reference(x, weight, eps):
    xf = x.astype(jnp.float32)
    rms = jnp.sqrt(jnp.mean(xf * xf, axis=-1, keepdims=True) + eps)
    y = xf / rms
    if weight is not None:
        y = y * weight.astype(jnp.float32)
    return y


if __name__ == "__main__":
    eps = 1e-6
    key = jax.random.PRNGKey(0)
    k1, k2, k3, k4 = jax.random.split(key, 4)

    # 1) Affine, small per-head dim (lane-folded path), rows % g == 0.
    #    Matches nn.Parameter(torch.ones(dim)) init.
    x = jax.random.normal(k1, (2, 8, 32), dtype=jnp.float32)
    w = jnp.ones((32,), dtype=jnp.float32)
    out = rmsnorm(x, w, eps=eps)
    jax.block_until_ready(out)
    assert out.shape == x.shape
    assert jnp.allclose(out, _reference(x, w, eps), atol=1e-5, rtol=1e-5)

    # 2) No-affine, ragged row count (15) -> lane-folded path with row padding.
    x2 = jax.random.normal(k2, (3, 5, 32), dtype=jnp.float32)
    out2 = rmsnorm(x2, None, eps=eps)
    jax.block_until_ready(out2)
    assert out2.shape == x2.shape
    assert jnp.allclose(out2, _reference(x2, None, eps), atol=1e-5, rtol=1e-5)

    # 3) dim not a multiple of 128 (192): standard path, full-dim lane block;
    #    checks the reduction ignores the masked padding lanes.
    x3 = jax.random.normal(k3, (2, 16, 192), dtype=jnp.float32)
    w3 = jax.random.normal(k4, (192,), dtype=jnp.float32) * 0.1 + 1.0
    out3 = rmsnorm(x3, w3, eps=eps)
    jax.block_until_ready(out3)
    assert jnp.allclose(out3, _reference(x3, w3, eps), atol=1e-5, rtol=1e-5)

    # 4) bf16 path: f32 reduction, bf16 normalize/scale multiplies.
    xb = jax.random.normal(k4, (2, 16, 256), dtype=jnp.float32).astype(jnp.bfloat16)
    wb = jnp.ones((256,), dtype=jnp.bfloat16)
    outb = rmsnorm(xb, wb, eps=eps)
    jax.block_until_ready(outb)
    refb = _reference(xb, wb, eps)
    assert outb.dtype == jnp.bfloat16
    assert jnp.allclose(outb.astype(jnp.float32), refb, atol=3e-2, rtol=3e-2)

    print("KERNEL_OK")
</pallas_src>

<mosaic_0001>
module attributes {stable_mosaic.version = 11 : i64} {
  func.func @_packed_affine_kernel(%arg0: i32, %arg1: memref<8x128xf32, #tpu.memory_space<vmem>>, %arg2: memref<128x4xf32, #tpu.memory_space<vmem>>, %arg3: memref<1x128xf32, #tpu.memory_space<vmem>>, %arg4: memref<8x128xf32, #tpu.memory_space<vmem>>) attributes {dimension_semantics = [#tpu.dimension_semantics<parallel>], iteration_bounds = array<i64: 1>, scalar_prefetch = 0 : i64, scratch_operands = 0 : i64, tpu.core_type = #tpu.core_type<tc>, window_params = [{transform_indices = @transform_0, window_bounds = array<i64: 8, 128>}, {pipeline_mode = #tpu.pipeline_mode<synchronous>, transform_indices = @transform_1, window_bounds = array<i64: 128, 4>}, {pipeline_mode = #tpu.pipeline_mode<synchronous>, transform_indices = @transform_2, window_bounds = array<i64: 1, 128>}, {transform_indices = @transform_3, window_bounds = array<i64: 8, 128>}]} {
    %c0 = arith.constant 0 : index
    %c0_0 = arith.constant 0 : index
    %0 = vector.load %arg1[%c0, %c0_0] : memref<8x128xf32, #tpu.memory_space<vmem>>, vector<8x128xf32>
    %c0_1 = arith.constant 0 : index
    %c0_2 = arith.constant 0 : index
    %1 = vector.load %arg2[%c0_1, %c0_2] : memref<128x4xf32, #tpu.memory_space<vmem>>, vector<128x4xf32>
    %2 = arith.mulf %0, %0 : vector<8x128xf32>
    %cst = arith.constant dense<0.000000e+00> : vector<8x4xf32>
    %3 = tpu.matmul %2, %1, %cst {dimension_numbers = #tpu.dot_dimension_numbers<[1], [0], [0], [1], [0, 0, 1, 1], [], []>} : vector<8x128xf32>, vector<128x4xf32>, vector<8x4xf32> -> vector<8x4xf32>
    %cst_3 = arith.constant 3.125000e-02 : f32
    %4 = vector.broadcast %cst_3 : f32 to vector<8x4xf32>
    %5 = arith.mulf %3, %4 : vector<8x4xf32>
    %cst_4 = arith.constant 9.99999997E-7 : f32
    %6 = vector.broadcast %cst_4 : f32 to vector<8x4xf32>
    %7 = arith.addf %5, %6 : vector<8x4xf32>
    %8 = math.rsqrt %7 : vector<8x4xf32>
    %cst_5 = arith.constant dense<0.000000e+00> : vector<8x128xf32>
    %9 = tpu.matmul %8, %1, %cst_5 {dimension_numbers = #tpu.dot_dimension_numbers<[1], [1], [0], [0], [0, 0, 1, 0], [], []>} : vector<8x4xf32>, vector<128x4xf32>, vector<8x128xf32> -> vector<8x128xf32>
    %10 = arith.mulf %0, %9 : vector<8x128xf32>
    %c0_6 = arith.constant 0 : index
    %c0_7 = arith.constant 0 : index
    %11 = vector.load %arg3[%c0_6, %c0_7] : memref<1x128xf32, #tpu.memory_space<vmem>>, vector<1x128xf32>
    %12 = vector.broadcast %11 : vector<1x128xf32> to vector<8x128xf32>
    %13 = arith.mulf %10, %12 : vector<8x128xf32>
    %c0_8 = arith.constant 0 : index
    %c0_9 = arith.constant 0 : index
    %14 = vector.load %arg4[%c0_8, %c0_9] : memref<8x128xf32, #tpu.memory_space<vmem>>, vector<8x128xf32>
    tpu.vector_store %arg4[%c0_8, %c0_9], %13 {strides = array<i32>} : memref<8x128xf32, #tpu.memory_space<vmem>>, vector<8x128xf32>,
    return
  }
  func.func @transform_0(%arg0: i32) -> (i32, i32) {
    %c0_i32 = arith.constant 0 : i32
    %c0_i32_0 = arith.constant 0 : i32
    return %arg0, %c0_i32 : i32, i32
  }
  func.func @transform_1(%arg0: i32) -> (i32, i32) {
    %c0_i32 = arith.constant 0 : i32
    %c0_i32_0 = arith.constant 0 : i32
    %c0_i32_1 = arith.constant 0 : i32
    return %c0_i32, %c0_i32_0 : i32, i32
  }
  func.func @transform_2(%arg0: i32) -> (i32, i32) {
    %c0_i32 = arith.constant 0 : i32
    %c0_i32_0 = arith.constant 0 : i32
    %c0_i32_1 = arith.constant 0 : i32
    return %c0_i32, %c0_i32_0 : i32, i32
  }
  func.func @transform_3(%arg0: i32) -> (i32, i32) {
    %c0_i32 = arith.constant 0 : i32
    %c0_i32_0 = arith.constant 0 : i32
    return %arg0, %c0_i32 : i32, i32
  }
}

</mosaic_0001>

<llo_original>
// kernel: tpu_custom_call.1
$region0: #{tpu_custom_call.1}
  #allocation0 [shape = 'u32[]', space=smem, size = 0x4, offset = 0x4, fixed_abs, tag = 'smem constant byte address 0x4 - core index']
  #allocation1 [shape = 'u32[144,128]{1,0:T(1,128)}', space=vmem, size = 0x12000, scoped, tag = 'internal scratch']
  %s0 = inlined_call_operand.vmem [shape: f32[4,128], index: 0, kind: input, shape index: {}]
  %s1 = inlined_call_operand.vmem [shape: f32[128,4], index: 1, kind: input, shape index: {}]
  %s2 = inlined_call_operand.vmem [shape: f32[1,128], index: 2, kind: input, shape index: {}]
  %s3 = inlined_call_operand.hbm [shape: f32[4,128], index: 3, kind: output, shape index: {}]
  %s4 = sld [smem:[#allocation0]]
  $region22: #{tpu_custom_call.1} parent=0
    _
  %s6 = ssub.s32 1, %s4
  %s7 = scalar_select 0, %s6, %s4
  $region1: #{tpu_custom_call.1} parent=0
    #allocation2 [shape = 'u8[4096]{0}', space=vmem, size = 0x1000, scoped, tag = 'output window, operand 0, single buffered']
    #allocation3 [shape = 's32[1]{0}', space=sflag, size = 0x4, scoped, tag = 'scoped memory for tpu_custom_call.1']
    %8 = vsyncpa [#allocation3], 0
    // Predicated region
    $region2: #{tpu_custom_call.1} parent=1 // pred_check
      _
    $region3: #{tpu_custom_call.1} parent=1 // pred_check_branch
      %10 = sbr.rel (0) target = $region5
    $region4: #{tpu_custom_call.1} parent=1 // pred_region
      _
    $region5: #{tpu_custom_call.1} parent=1 // pred_fallthru
      _
    // Predicated region
    $region6: #{tpu_custom_call.1} parent=1 // pred_check
      _
    $region7: #{tpu_custom_call.1} parent=1 // pred_check_branch
      %12 = sbr.rel (0) target = $region9
    $region8: #{tpu_custom_call.1} parent=1 // pred_region
      _
    $region9: #{tpu_custom_call.1} parent=1 // pred_fallthru
      _
    // Predicated region
    $region10: #{tpu_custom_call.1} parent=1 // pred_check
      _
    $region11: #{tpu_custom_call.1} parent=1 // pred_check_branch
      %14 = sbr.rel (0) target = $region13
    $region12: #{tpu_custom_call.1} parent=1 // pred_region
      _
    $region13: #{tpu_custom_call.1} parent=1 // pred_fallthru
      _
    %v15 = vld [vmem:[%s0] sm:$0xff]
    %v16 = vld [vmem:[%s1] sm:$0xff]
    %v17 = vld [vmem:[%s1 + $0x8] sm:$0xff]
    %v18 = vld [vmem:[%s1 + $0x10] sm:$0xff]
    %v19 = vld [vmem:[%s1 + $0x18] sm:$0xff]
    %v20 = vld [vmem:[%s1 + $0x20] sm:$0xff]
    %v21 = vld [vmem:[%s1 + $0x28] sm:$0xff]
    %v22 = vld [vmem:[%s1 + $0x30] sm:$0xff]
    %v23 = vld [vmem:[%s1 + $0x38] sm:$0xff]
    %v24 = vld [vmem:[%s1 + $0x40] sm:$0xff]
    %v25 = vld [vmem:[%s1 + $0x48] sm:$0xff]
    %v26 = vld [vmem:[%s1 + $0x50] sm:$0xff]
    %v27 = vld [vmem:[%s1 + $0x58] sm:$0xff]
    %v28 = vld [vmem:[%s1 + $0x60] sm:$0xff]
    %v29 = vld [vmem:[%s1 + $0x68] sm:$0xff]
    %v30 = vld [vmem:[%s1 + $0x70] sm:$0xff]
    %v31 = vld [vmem:[%s1 + $0x78] sm:$0xff]
    %v32 = vmul.f32 %v15, %v15
    %33 = vmatprep.subr.mxu0 0.0
    %34 = vmatpush1.msra.mxu0 %v31
    %35 = vmatprep.subr.mxu0 0.0
    %36 = vmatpush1.msra.mxu0 %v30
    %37 = vmatprep.subr.mxu0 0.0
    %38 = vmatpush1.msra.mxu0 %v29
    %39 = vmatprep.subr.mxu0 0.0
    %40 = vmatpush1.msra.mxu0 %v28
    %41 = vmatprep.subr.mxu0 0.0
    %42 = vmatpush1.msra.mxu0 %v27
    %43 = vmatprep.subr.mxu0 0.0
    %44 = vmatpush1.msra.mxu0 %v26
    %45 = vmatprep.subr.mxu0 0.0
    %46 = vmatpush1.msra.mxu0 %v25
    %47 = vmatprep.subr.mxu0 0.0
    %48 = vmatpush1.msra.mxu0 %v24
    %49 = vmatprep.subr.mxu0 0.0
    %50 = vmatpush1.msra.mxu0 %v23
    %51 = vmatprep.subr.mxu0 0.0
    %52 = vmatpush1.msra.mxu0 %v22
    %53 = vmatprep.subr.mxu0 0.0
    %54 = vmatpush1.msra.mxu0 %v21
    %55 = vmatprep.subr.mxu0 0.0
    %56 = vmatpush1.msra.mxu0 %v20
    %57 = vmatprep.subr.mxu0 0.0
    %58 = vmatpush1.msra.mxu0 %v19
    %59 = vmatprep.subr.mxu0 0.0
    %60 = vmatpush1.msra.mxu0 %v18
    %61 = vmatprep.subr.mxu0 0.0
    %62 = vmatpush1.msra.mxu0 %v17
    %63 = vmatprep.subr.mxu0 0.0
    %64 = vmatpush1.msra.mxu0 %v16
    %65 = vmatprep.subr.mxu0 0.0
    %66 = vmatpush2.msra.mxu0 0.0
    %67 = vmatprep.subr.mxu0 0.0
    %68 = vmatpush2.msra.mxu0 0.0
    %69 = vmatprep.subr.mxu0 0.0
    %70 = vmatpush2.msra.mxu0 0.0
    %71 = vmatprep.subr.mxu0 0.0
    %72 = vmatpush2.msra.mxu0 0.0
    %73 = vmatprep.subr.mxu0 0.0
    %74 = vmatpush2.msra.mxu0 0.0
    %75 = vmatprep.subr.mxu0 0.0
    %76 = vmatpush2.msra.mxu0 0.0
    %77 = vmatprep.subr.mxu0 0.0
    %78 = vmatpush2.msra.mxu0 0.0
    %79 = vmatprep.subr.mxu0 0.0
    %80 = vmatpush2.msra.mxu0 0.0
    %81 = vmatprep.subr.mxu0 0.0
    %82 = vmatpush2.msra.mxu0 0.0
    %83 = vmatprep.subr.mxu0 0.0
    %84 = vmatpush2.msra.mxu0 0.0
    %85 = vmatprep.subr.mxu0 0.0
    %86 = vmatpush2.msra.mxu0 0.0
    %87 = vmatprep.subr.mxu0 0.0
    %88 = vmatpush2.msra.mxu0 0.0
    %89 = vmatprep.subr.mxu0 0.0
    %90 = vmatpush2.msra.mxu0 0.0
    %91 = vmatprep.subr.mxu0 0.0
    %92 = vmatpush2.msra.mxu0 0.0
    %93 = vmatprep.subr.mxu0 0.0
    %94 = vmatpush2.msra.mxu0 0.0
    %95 = vmatprep.subr.mxu0 0.0
    %96 = vmatpush2.msra.mxu0 0.0
    %97 = vmatprep.mubr.f32.mxu0 0.0
    %98 = vmatmul.mubr.f32.gmra.mxu0 %v32
    %v99 = vpop.f32.mrf.mxu0
    %v100 = vadd.f32 0.0, %v99
    %v101 = vpop.f32.mrf.mxu0
    %102 = vdwg.mxu0
    %v103 = vmul.f32 %v100, 0.03125
    %v104 = vadd.f32 %v103, 1e-06
    %v105 = vrsqrt.pop %v104
    %vm106 = vcmask 31744
    %v108 = vsel %vm106, %v105, 0
    %v111 = vsel %vm106, %v16, 0
    %v114 = vsel %vm106, %v17, 0
    %v117 = vsel %vm106, %v18, 0
    %v120 = vsel %vm106, %v19, 0
    %v123 = vsel %vm106, %v20, 0
    %v126 = vsel %vm106, %v21, 0
    %v129 = vsel %vm106, %v22, 0
    %v132 = vsel %vm106, %v23, 0
    %v135 = vsel %vm106, %v24, 0
    %v138 = vsel %vm106, %v25, 0
    %v141 = vsel %vm106, %v26, 0
    %v144 = vsel %vm106, %v27, 0
    %v147 = vsel %vm106, %v28, 0
    %v150 = vsel %vm106, %v29, 0
    %v153 = vsel %vm106, %v30, 0
    %v156 = vsel %vm106, %v31, 0
    %158 = vmatprep.subr.mxu0 0.0
    %159 = vmatpush1.xpose.msra.mxu0 %v156
    %160 = vmatprep.subr.mxu0 0.0
    %161 = vmatpush1.xpose.msra.mxu0 %v153
    %162 = vmatprep.subr.mxu0 0.0
    %163 = vmatpush1.xpose.msra.mxu0 %v150
    %164 = vmatprep.subr.mxu0 0.0
    %165 = vmatpush1.xpose.msra.mxu0 %v147
    %166 = vmatprep.subr.mxu0 0.0
    %167 = vmatpush1.xpose.msra.mxu0 %v144
    %168 = vmatprep.subr.mxu0 0.0
    %169 = vmatpush1.xpose.msra.mxu0 %v141
    %170 = vmatprep.subr.mxu0 0.0
    %171 = vmatpush1.xpose.msra.mxu0 %v138
    %172 = vmatprep.subr.mxu0 0.0
    %173 = vmatpush1.xpose.msra.mxu0 %v135
    %174 = vmatprep.subr.mxu0 0.0
    %175 = vmatpush1.xpose.msra.mxu0 %v132
    %176 = vmatprep.subr.mxu0 0.0
    %177 = vmatpush1.xpose.msra.mxu0 %v129
    %178 = vmatprep.subr.mxu0 0.0
    %179 = vmatpush1.xpose.msra.mxu0 %v126
    %180 = vmatprep.subr.mxu0 0.0
    %181 = vmatpush1.xpose.msra.mxu0 %v123
    %182 = vmatprep.subr.mxu0 0.0
    %183 = vmatpush1.xpose.msra.mxu0 %v120
    %184 = vmatprep.subr.mxu0 0.0
    %185 = vmatpush1.xpose.msra.mxu0 %v117
    %186 = vmatprep.subr.mxu0 0.0
    %187 = vmatpush1.xpose.msra.mxu0 %v114
    %188 = vmatprep.subr.mxu0 0.0
    %189 = vmatpush1.xpose.msra.mxu0 %v111
    %190 = vmatprep.subr.mxu0 0.0
    %191 = vmatpush2.xpose.msra.mxu0 0.0
    %192 = vmatprep.subr.mxu0 0.0
    %193 = vmatpush2.xpose.msra.mxu0 0.0
    %194 = vmatprep.subr.mxu0 0.0
    %195 = vmatpush2.xpose.msra.mxu0 0.0
    %196 = vmatprep.subr.mxu0 0.0
    %197 = vmatpush2.xpose.msra.mxu0 0.0
    %198 = vmatprep.subr.mxu0 0.0
    %199 = vmatpush2.xpose.msra.mxu0 0.0
    %200 = vmatprep.subr.mxu0 0.0
    %201 = vmatpush2.xpose.msra.mxu0 0.0
    %202 = vmatprep.subr.mxu0 0.0
    %203 = vmatpush2.xpose.msra.mxu0 0.0
    %204 = vmatprep.subr.mxu0 0.0
    %205 = vmatpush2.xpose.msra.mxu0 0.0
    %206 = vmatprep.subr.mxu0 0.0
    %207 = vmatpush2.xpose.msra.mxu0 0.0
    %208 = vmatprep.subr.mxu0 0.0
    %209 = vmatpush2.xpose.msra.mxu0 0.0
    %210 = vmatprep.subr.mxu0 0.0
    %211 = vmatpush2.xpose.msra.mxu0 0.0
    %212 = vmatprep.subr.mxu0 0.0
    %213 = vmatpush2.xpose.msra.mxu0 0.0
    %214 = vmatprep.subr.mxu0 0.0
    %215 = vmatpush2.xpose.msra.mxu0 0.0
    %216 = vmatprep.subr.mxu0 0.0
    %217 = vmatpush2.xpose.msra.mxu0 0.0
    %218 = vmatprep.subr.mxu0 0.0
    %219 = vmatpush2.xpose.msra.mxu0 0.0
    %220 = vmatprep.subr.mxu0 0.0
    %221 = vmatpush2.xpose.msra.mxu0 0.0
    %222 = vmatprep.mubr.f32.mxu0 0.0
    %223 = vmatmul.mubr.f32.gmra.mxu0 %v108
    %v224 = vpop.f32.mrf.mxu0
    %v225 = vadd.f32 0.0, %v224
    %v226 = vpop.f32.mrf.mxu0
    %227 = vdwg.mxu0
    %v228 = vmul.f32 %v15, %v225
    %v229 = vld [vmem:[%s2] sm:$0x1]
    %v231 = vlaneseq
    %v232 = vshrl.u32 %v231, 7
    %v233 = vsub.s32 0, %v232
    %v234 = vrot.slane %v229, %v233
    %v236 = vmul.f32 %v228, %v234
    %237 = vst [vmem:[#allocation2] sm:$0xff] %v236
    // Predicated region
    $region14: #{tpu_custom_call.1} parent=1 // pred_check
      _
    $region15: #{tpu_custom_call.1} parent=1 // pred_check_branch
      %239 = sbr.rel (0) target = $region17
    $region16: #{tpu_custom_call.1} parent=1 // pred_region
      %s241 = ssub.s32 128, 64
      %242 = vsyncadd [#allocation3], %s241
      %s243 = sshll.u32 [#allocation2], 4
      %s244 = int_to_ptr.vmem [resolvable:$true] %s243
      %249 = dma.vmem_to_hbm [thread:$0]  %s244, 64, %s3, [#allocation3], 64, 64, 4
    $region17: #{tpu_custom_call.1} parent=1 // pred_fallthru
      _
    // Predicated region
    $region18: #{tpu_custom_call.1} parent=1 // pred_check
      _
    $region19: #{tpu_custom_call.1} parent=1 // pred_check_branch
      %251 = sbr.rel (0) target = $region21
    $region20: #{tpu_custom_call.1} parent=1 // pred_region
      %252 = dma.done [#allocation3], 128
    $region21: #{tpu_custom_call.1} parent=1 // pred_fallthru
      _
    %253 = vsyncpa [#allocation3], 1

</llo_original>
